<compile_context>
chip_gen: v5e
topology: v5e:2x2
jax: 0.10.0
libtpu: 0.0.40
codegen_flags: <defaults>
</compile_context>

<pallas_src>
import functools

import jax
import jax.numpy as jnp
from jax.experimental import pallas as pl
from jax.experimental.pallas import tpu as pltpu

EPS = 1e-5  # PyTorch BatchNorm1d default eps


def _round_up(x, m):
    return (x + m - 1) // m * m


# ----------------------------------------------------------------------------
# Param slab layout, shape (HS, 8), HS = round_up(max(h1, h2, 8), 8):
#   col 0: b1'  (bn_cont folded)        col 4: bn2 gamma
#   col 1: b2                           col 5: bn2 beta
#   col 2: bn1 gamma                    col 6: b3 (padded to outp rows)
#   col 3: bn1 beta
# Stats slab (output of kernel A), shape (HS, 8):
#   col 0: BN1 scale   col 1: BN1 shift   col 2: BN2 scale   col 3: BN2 shift
# ----------------------------------------------------------------------------


# ----------------------------------------------------------------------------
# Kernel A: full-batch BN1/BN2 statistics -> folded (scale, shift) slab.
# grid = (2 phases, nt batch tiles), feature-major blocks.
# ----------------------------------------------------------------------------
def _stats_kernel(x_ref, w1_ref, w2_ref, slab_ref, stats_ref, acc_ref, *,
                  b_real, masked):
    h1 = w1_ref.shape[0]
    h2 = w2_ref.shape[0]
    bm = x_ref.shape[1]
    p = pl.program_id(0)          # phase: 0 -> BN1 stats, 1 -> BN2 stats
    i = pl.program_id(1)          # batch tile
    nt = pl.num_programs(1)
    inv_b = 1.0 / float(b_real)

    @pl.when((p == 0) & (i == 0))
    def _init():
        acc_ref[...] = jnp.zeros_like(acc_ref)
        stats_ref[...] = jnp.zeros_like(stats_ref)

    # Layer 1 (bn_cont already folded into W1'/b1'): a1 = relu(W1' @ x + b1')
    a1 = jnp.maximum(
        jnp.dot(w1_ref[...], x_ref[...], preferred_element_type=jnp.float32)
        + slab_ref[:h1, 0:1], 0.0)                                    # (h1, bm)

    if masked:  # static: only emitted when the batch was actually padded
        col = jax.lax.broadcasted_iota(jnp.int32, (1, bm), 1) + i * bm
        valid = col < b_real
    else:
        valid = None

    def _acc(v, c_sum, c_sumsq, h):
        if valid is not None:
            v = jnp.where(valid, v, 0.0)
        acc_ref[:h, c_sum:c_sum + 1] += jnp.sum(v, axis=1, keepdims=True)
        acc_ref[:h, c_sumsq:c_sumsq + 1] += jnp.sum(v * v, axis=1, keepdims=True)

    def _finalize(c_sum, c_sumsq, g_col, b_col, s_col, h):
        mean = acc_ref[:h, c_sum:c_sum + 1] * inv_b
        var = jnp.maximum(
            acc_ref[:h, c_sumsq:c_sumsq + 1] * inv_b - mean * mean, 0.0)
        sc = slab_ref[:h, g_col:g_col + 1] * jax.lax.rsqrt(var + EPS)
        stats_ref[:h, s_col:s_col + 1] = sc
        stats_ref[:h, s_col + 1:s_col + 2] = slab_ref[:h, b_col:b_col + 1] - mean * sc

    @pl.when(p == 0)
    def _phase_bn1():
        _acc(a1, 0, 1, h1)

        @pl.when(i == nt - 1)
        def _():
            _finalize(0, 1, 2, 3, 0, h1)

    @pl.when(p == 1)
    def _phase_bn2():
        a1b = a1 * stats_ref[:h1, 0:1] + stats_ref[:h1, 1:2]          # BN1
        a2 = jnp.maximum(
            jnp.dot(w2_ref[...], a1b, preferred_element_type=jnp.float32)
            + slab_ref[:h2, 1:2], 0.0)                                # (h2, bm)
        _acc(a2, 2, 3, h2)

        @pl.when(i == nt - 1)
        def _():
            _finalize(2, 3, 4, 5, 2, h2)


# ----------------------------------------------------------------------------
# Kernel B: apply the folded BN scale/shift + the three Linear layers.
# Output block is (outp, bm): lane-dense along the batch, only outp (<=8) rows.
# ----------------------------------------------------------------------------
def _apply_kernel(x_ref, w1_ref, w2_ref, w3_ref, slab_ref, stats_ref, out_ref):
    h1 = w1_ref.shape[0]
    h2 = w2_ref.shape[0]
    outp = out_ref.shape[0]
    a1 = jnp.maximum(
        jnp.dot(w1_ref[...], x_ref[...], preferred_element_type=jnp.float32)
        + slab_ref[:h1, 0:1], 0.0)                                    # Linear -> ReLU
    a1 = a1 * stats_ref[:h1, 0:1] + stats_ref[:h1, 1:2]               # BN(h1)
    a2 = jnp.maximum(
        jnp.dot(w2_ref[...], a1, preferred_element_type=jnp.float32)
        + slab_ref[:h2, 1:2], 0.0)                                    # Linear -> ReLU
    a2 = a2 * stats_ref[:h2, 2:3] + stats_ref[:h2, 3:4]               # BN(h2)
    out_ref[...] = (
        jnp.dot(w3_ref[...], a2, preferred_element_type=jnp.float32)
        + slab_ref[:outp, 6:7])                                       # Linear (padded rows = 0)


# ----------------------------------------------------------------------------
# Wrapper
# ----------------------------------------------------------------------------
def _choose_bm(b, d_in, h1, h2, outp, block_cols):
    block_cols = max(128, (block_cols // 128) * 128)
    # keep the per-tile activation footprint (~(d_in+h1+h2+outp) f32 rows) ~<= 6 MiB
    row_bytes = 4 * (d_in + h1 + h2 + outp + 16)
    cap = max(128, ((6 * 1024 * 1024) // row_bytes) // 128 * 128)
    return max(128, min(block_cols, cap, _round_up(b, 128)))


def stage1_forward(x_cat, x_cont, params, *, block_cols=8192):
    # --- glue: embedding gather + concat (plain JAX); dropout p=0 is identity ---
    emb_cols = [jnp.take(tbl, x_cat[:, i], axis=0)
                for i, tbl in enumerate(params["emb_tables"])]
    x_emb = jnp.concatenate(emb_cols, axis=1).astype(jnp.float32)
    xc = x_cont.astype(jnp.float32)

    b = x_emb.shape[0]
    n_emb = x_emb.shape[1]
    n_cont = xc.shape[1]
    d_in = n_emb + n_cont
    h1 = params["w1"].shape[1]
    h2 = params["w2"].shape[1]
    out = params["w3"].shape[1]
    outp = _round_up(max(out, 1), 8)
    HS = _round_up(max(h1, h2, 8), 8)

    # --- bn_cont training statistics in XLA (exact two-pass), folded into layer 1 ---
    mean_c = jnp.mean(xc, axis=0)
    var_c = jnp.mean((xc - mean_c) ** 2, axis=0)          # biased, training mode
    sc_c = params["bn_cont_gamma"].reshape(-1) * jax.lax.rsqrt(var_c + EPS)
    sh_c = params["bn_cont_beta"].reshape(-1) - mean_c * sc_c
    in_scale = jnp.concatenate([jnp.ones((n_emb,), jnp.float32), sc_c])
    in_shift = jnp.concatenate([jnp.zeros((n_emb,), jnp.float32), sh_c])

    w1 = params["w1"].astype(jnp.float32)                 # (d_in, h1)
    w1f_t = (w1 * in_scale[:, None]).T                    # (h1, d_in), bn_cont folded
    b1f = params["b1"].reshape(-1) + in_shift @ w1        # (h1,)
    w2t = params["w2"].astype(jnp.float32).T              # (h2, h1)
    w3p = jnp.zeros((outp, h2), jnp.float32).at[:out, :].set(
        params["w3"].astype(jnp.float32).T)               # (outp, h2), zero-padded rows

    # --- param slab (HS, 8) ---
    slab = jnp.zeros((HS, 8), jnp.float32)
    slab = slab.at[:h1, 0].set(b1f)
    slab = slab.at[:h2, 1].set(params["b2"].reshape(-1))
    slab = slab.at[:h1, 2].set(params["bn1_gamma"].reshape(-1))
    slab = slab.at[:h1, 3].set(params["bn1_beta"].reshape(-1))
    slab = slab.at[:h2, 4].set(params["bn2_gamma"].reshape(-1))
    slab = slab.at[:h2, 5].set(params["bn2_beta"].reshape(-1))
    slab = slab.at[:out, 6].set(params["b3"].reshape(-1))

    # --- feature-major input (d_in, Bp): features on sublanes, batch on lanes ---
    x = jnp.concatenate([x_emb, xc], axis=1).T            # (d_in, b)
    bm = _choose_bm(b, d_in, h1, h2, outp, block_cols)    # multiple of 128 lanes
    bp = _round_up(b, bm)
    if bp != b:
        x = jnp.pad(x, ((0, 0), (0, bp - b)))
    nt = bp // bm
    masked = bp != b

    const2 = lambda p, i: (0, 0)
    const1 = lambda i: (0, 0)

    # ---- pass 1: full-batch BN1/BN2 statistics (folded scale/shift slab) ----
    stats = pl.pallas_call(
        functools.partial(_stats_kernel, b_real=b, masked=masked),
        grid=(2, nt),
        in_specs=[
            pl.BlockSpec((d_in, bm), lambda p, i: (0, i)),   # resident when nt == 1
            pl.BlockSpec((h1, d_in), const2),
            pl.BlockSpec((h2, h1), const2),
            pl.BlockSpec((HS, 8), const2),
        ],
        out_specs=pl.BlockSpec((HS, 8), const2),
        out_shape=jax.ShapeDtypeStruct((HS, 8), jnp.float32),
        scratch_shapes=[pltpu.VMEM((HS, 8), jnp.float32)],
        compiler_params=pltpu.CompilerParams(
            dimension_semantics=("arbitrary", "arbitrary")),
        cost_estimate=pl.CostEstimate(
            flops=int(2 * bp * (2 * h1 * d_in + h2 * h1)),
            transcendentals=int(h1 + h2),
            bytes_accessed=int(2 * bp * d_in * 4
                               + 4 * (h1 * d_in + h2 * h1 + 3 * HS * 8))),
    )(x, w1f_t, w2t, slab)

    # ---- pass 2: batch-tiled, megacore-parallel apply; lane-dense (outp, Bp) output ----
    out_fm = pl.pallas_call(
        _apply_kernel,
        grid=(nt,),
        in_specs=[
            pl.BlockSpec((d_in, bm), lambda i: (0, i)),
            pl.BlockSpec((h1, d_in), const1),
            pl.BlockSpec((h2, h1), const1),
            pl.BlockSpec((outp, h2), const1),
            pl.BlockSpec((HS, 8), const1),
            pl.BlockSpec((HS, 8), const1),
        ],
        out_specs=pl.BlockSpec((outp, bm), lambda i: (0, i)),
        out_shape=jax.ShapeDtypeStruct((outp, bp), jnp.float32),
        compiler_params=pltpu.CompilerParams(
            dimension_semantics=("parallel",)),
        cost_estimate=pl.CostEstimate(
            flops=int(2 * bp * (h1 * d_in + h2 * h1 + outp * h2)),
            transcendentals=0,
            bytes_accessed=int(bp * d_in * 4 + bp * outp * 4
                               + 4 * (h1 * d_in + h2 * h1 + outp * h2 + 2 * HS * 8))),
    )(x, w1f_t, w2t, w3p, slab, stats)

    return out_fm[:out, :b].T


# ----------------------------------------------------------------------------
# Pure-JAX reference (PyTorch-equivalent math) and parameter construction
# ----------------------------------------------------------------------------
def _bn_ref(x, gamma, beta):
    mean = jnp.mean(x, axis=0, keepdims=True)
    var = jnp.mean((x - mean) ** 2, axis=0, keepdims=True)   # biased, training mode
    return (x - mean) * jax.lax.rsqrt(var + EPS) * gamma + beta


def _reference_forward(x_cat, x_cont, params):
    emb_cols = [jnp.take(tbl, x_cat[:, i], axis=0)
                for i, tbl in enumerate(params["emb_tables"])]
    x_emb = jnp.concatenate(emb_cols, axis=1)
    xc = _bn_ref(x_cont, params["bn_cont_gamma"], params["bn_cont_beta"])
    x = jnp.concatenate([x_emb, xc], axis=1)
    a1 = jnp.maximum(x @ params["w1"] + params["b1"], 0.0)
    a1 = _bn_ref(a1, params["bn1_gamma"], params["bn1_beta"])
    a2 = jnp.maximum(a1 @ params["w2"] + params["b2"], 0.0)
    a2 = _bn_ref(a2, params["bn2_gamma"], params["bn2_beta"])
    return a2 @ params["w3"] + params["b3"]


def make_params(key, emb_sizes, n_cont, hidden_sizes, out_size):
    ks = iter(jax.random.split(key, 16))
    params = {}
    # embeddings: normal * 0.01 (matches emb.weight.normal_().fmod_(2).mul_(0.01))
    params["emb_tables"] = [
        jax.random.normal(next(ks), (nc, nd), jnp.float32) * 0.01 for nc, nd in emb_sizes
    ]
    n_emb = sum(nd for _, nd in emb_sizes)
    d_in = n_emb + n_cont
    h1, h2 = hidden_sizes

    def kaiming(k, n_in, n_out):  # kaiming_normal_ (fan_in, gain sqrt(2)); stored as (in, out)
        return jax.random.normal(k, (n_in, n_out), jnp.float32) * jnp.sqrt(2.0 / n_in)

    def bias(k, n_in, n_out):     # PyTorch Linear default bias init
        bound = 1.0 / jnp.sqrt(float(n_in))
        return jax.random.uniform(k, (1, n_out), jnp.float32, -bound, bound)

    params["w1"] = kaiming(next(ks), d_in, h1)
    params["b1"] = bias(next(ks), d_in, h1)
    params["w2"] = kaiming(next(ks), h1, h2)
    params["b2"] = bias(next(ks), h1, h2)
    params["w3"] = kaiming(next(ks), h2, out_size)
    params["b3"] = bias(next(ks), h2, out_size)

    params["bn_cont_gamma"] = jnp.ones((1, n_cont), jnp.float32)
    params["bn_cont_beta"] = jnp.zeros((1, n_cont), jnp.float32)
    params["bn1_gamma"] = jnp.ones((1, h1), jnp.float32)
    params["bn1_beta"] = jnp.zeros((1, h1), jnp.float32)
    params["bn2_gamma"] = jnp.ones((1, h2), jnp.float32)
    params["bn2_beta"] = jnp.zeros((1, h2), jnp.float32)
    return params


if __name__ == "__main__":
    emb_sizes = [(10, 3), (7, 5)]   # n_emb = 8
    n_cont = 4
    hidden_sizes = [32, 16]
    out_size = 1
    B = 200                         # deliberately NOT a multiple of the tile size

    key = jax.random.PRNGKey(0)
    k_par, k_cat, k_cont = jax.random.split(key, 3)
    params = make_params(k_par, emb_sizes, n_cont, hidden_sizes, out_size)

    kc = jax.random.split(k_cat, len(emb_sizes))
    x_cat = jnp.stack(
        [jax.random.randint(kc[i], (B,), 0, nc, jnp.int32)
         for i, (nc, _) in enumerate(emb_sizes)],
        axis=1,
    )                                                # (B, n_categorical) int32
    x_cont = jax.random.normal(k_cont, (B, n_cont), jnp.float32)

    ref = _reference_forward(x_cat, x_cont, params)

    # default tiling (single resident tile) and a forced multi-tile + ragged-tail case
    for bc in (8192, 128):
        out = jax.block_until_ready(stage1_forward(x_cat, x_cont, params, block_cols=bc))
        assert out.shape == (B, out_size)
        max_err = float(jnp.max(jnp.abs(out - ref)))
        assert jnp.allclose(out, ref, atol=1e-3, rtol=1e-3), (bc, max_err)

    print("KERNEL_OK")
</pallas_src>

<mosaic_0001>
module attributes {stable_mosaic.version = 11 : i64} {
  func.func @_stats_kernel(%arg0: i32, %arg1: i32, %arg2: memref<12x256xf32, #tpu.memory_space<vmem>>, %arg3: memref<32x12xf32, #tpu.memory_space<vmem>>, %arg4: memref<16x32xf32, #tpu.memory_space<vmem>>, %arg5: memref<32x8xf32, #tpu.memory_space<vmem>>, %arg6: memref<32x8xf32, #tpu.memory_space<vmem>>, %arg7: memref<32x8xf32, #tpu.memory_space<vmem>>) attributes {dimension_semantics = [#tpu.dimension_semantics<arbitrary>, #tpu.dimension_semantics<arbitrary>], iteration_bounds = array<i64: 2, 1>, scalar_prefetch = 0 : i64, scratch_operands = 1 : i64, tpu.core_type = #tpu.core_type<tc>, window_params = [{transform_indices = @transform_0, window_bounds = array<i64: 12, 256>}, {pipeline_mode = #tpu.pipeline_mode<synchronous>, transform_indices = @transform_1, window_bounds = array<i64: 32, 12>}, {pipeline_mode = #tpu.pipeline_mode<synchronous>, transform_indices = @transform_2, window_bounds = array<i64: 16, 32>}, {pipeline_mode = #tpu.pipeline_mode<synchronous>, transform_indices = @transform_3, window_bounds = array<i64: 32, 8>}, {pipeline_mode = #tpu.pipeline_mode<synchronous>, transform_indices = @transform_4, window_bounds = array<i64: 32, 8>}]} {
    %c0_i32 = arith.constant 0 : i32
    %0 = arith.cmpi eq, %arg0, %c0_i32 : i32
    %c0_i32_0 = arith.constant 0 : i32
    %1 = arith.cmpi eq, %arg1, %c0_i32_0 : i32
    %2 = arith.andi %0, %1 : i1
    %3 = arith.extui %2 : i1 to i32
    %c0_i32_1 = arith.constant 0 : i32
    %4 = arith.cmpi ne, %3, %c0_i32_1 : i32
    scf.if %4 {
      %cst_11 = arith.constant 0.000000e+00 : f32
      %25 = vector.broadcast %cst_11 : f32 to vector<32x8xf32>
      %c0_12 = arith.constant 0 : index
      %c0_13 = arith.constant 0 : index
      %26 = vector.load %arg7[%c0_12, %c0_13] : memref<32x8xf32, #tpu.memory_space<vmem>>, vector<32x8xf32>
      tpu.vector_store %arg7[%c0_12, %c0_13], %25 {strides = array<i32>} : memref<32x8xf32, #tpu.memory_space<vmem>>, vector<32x8xf32>,
      %cst_14 = arith.constant 0.000000e+00 : f32
      %27 = vector.broadcast %cst_14 : f32 to vector<32x8xf32>
      %c0_15 = arith.constant 0 : index
      %c0_16 = arith.constant 0 : index
      %28 = vector.load %arg6[%c0_15, %c0_16] : memref<32x8xf32, #tpu.memory_space<vmem>>, vector<32x8xf32>
      tpu.vector_store %arg6[%c0_15, %c0_16], %27 {strides = array<i32>} : memref<32x8xf32, #tpu.memory_space<vmem>>, vector<32x8xf32>,
    } else {
    }
    %c0 = arith.constant 0 : index
    %c0_2 = arith.constant 0 : index
    %5 = vector.load %arg3[%c0, %c0_2] : memref<32x12xf32, #tpu.memory_space<vmem>>, vector<32x12xf32>
    %c0_3 = arith.constant 0 : index
    %c0_4 = arith.constant 0 : index
    %6 = vector.load %arg2[%c0_3, %c0_4] : memref<12x256xf32, #tpu.memory_space<vmem>>, vector<12x256xf32>
    %cst = arith.constant dense<0.000000e+00> : vector<32x256xf32>
    %7 = tpu.matmul %5, %6, %cst {dimension_numbers = #tpu.dot_dimension_numbers<[1], [0], [0], [1], [0, 0, 1, 1], [], []>} : vector<32x12xf32>, vector<12x256xf32>, vector<32x256xf32> -> vector<32x256xf32>
    %c0_5 = arith.constant 0 : index
    %c0_6 = arith.constant 0 : index
    %8 = vector.load %arg5[%c0_5, %c0_6] : memref<32x8xf32, #tpu.memory_space<vmem>>, vector<32x1xf32>
    %9 = vector.broadcast %8 : vector<32x1xf32> to vector<32x256xf32>
    %10 = arith.addf %7, %9 : vector<32x256xf32>
    %cst_7 = arith.constant 0.000000e+00 : f32
    %11 = vector.broadcast %cst_7 : f32 to vector<32x256xf32>
    %12 = arith.maximumf %10, %11 : vector<32x256xf32>
    %13 = tpu.iota {dimensions = array<i32: 1>} : vector<1x256xi32>
    %c256_i32 = arith.constant 256 : i32
    %14 = arith.muli %arg1, %c256_i32 : i32
    %15 = vector.broadcast %14 : i32 to vector<1x256xi32>
    %16 = arith.addi %13, %15 : vector<1x256xi32>
    %c200_i32 = arith.constant 200 : i32
    %17 = vector.broadcast %c200_i32 : i32 to vector<1x256xi32>
    %18 = arith.cmpi slt, %16, %17 : vector<1x256xi32>
    %c0_i32_8 = arith.constant 0 : i32
    %19 = arith.cmpi eq, %arg0, %c0_i32_8 : i32
    %20 = arith.extui %19 : i1 to i32
    %c0_i32_9 = arith.constant 0 : i32
    %21 = arith.cmpi ne, %20, %c0_i32_9 : i32
    scf.if %21 {
      %cst_11 = arith.constant 0.000000e+00 : f32
      %25 = vector.shape_cast %18 : vector<1x256xi1> to vector<1x256xi1>
      %26 = vector.broadcast %25 : vector<1x256xi1> to vector<32x256xi1>
      %27 = vector.broadcast %cst_11 : f32 to vector<32x256xf32>
      %28 = arith.select %26, %12, %27 : vector<32x256xi1>, vector<32x256xf32>
      %c0_12 = arith.constant 0 : index
      %c0_13 = arith.constant 0 : index
      %29 = vector.load %arg7[%c0_12, %c0_13] : memref<32x8xf32, #tpu.memory_space<vmem>>, vector<32x1xf32>
      %cst_14 = arith.constant dense<0.000000e+00> : vector<32xf32>
      %30 = vector.multi_reduction <add>, %28, %cst_14 [1] : vector<32x256xf32> to vector<32xf32>
      %31 = vector.shape_cast %30 : vector<32xf32> to vector<32x1xf32>
      %32 = arith.addf %29, %31 : vector<32x1xf32>
      %c0_15 = arith.constant 0 : index
      %c0_16 = arith.constant 0 : index
      %33 = vector.load %arg7[%c0_15, %c0_16] : memref<32x8xf32, #tpu.memory_space<vmem>>, vector<32x1xf32>
      tpu.vector_store %arg7[%c0_15, %c0_16], %32 {strides = array<i32>} : memref<32x8xf32, #tpu.memory_space<vmem>>, vector<32x1xf32>,
      %c0_17 = arith.constant 0 : index
      %c1 = arith.constant 1 : index
      %34 = vector.load %arg7[%c0_17, %c1] : memref<32x8xf32, #tpu.memory_space<vmem>>, vector<32x1xf32>
      %35 = arith.mulf %28, %28 : vector<32x256xf32>
      %cst_18 = arith.constant dense<0.000000e+00> : vector<32xf32>
      %36 = vector.multi_reduction <add>, %35, %cst_18 [1] : vector<32x256xf32> to vector<32xf32>
      %37 = vector.shape_cast %36 : vector<32xf32> to vector<32x1xf32>
      %38 = arith.addf %34, %37 : vector<32x1xf32>
      %c0_19 = arith.constant 0 : index
      %c1_20 = arith.constant 1 : index
      %39 = vector.load %arg7[%c0_19, %c1_20] : memref<32x8xf32, #tpu.memory_space<vmem>>, vector<32x1xf32>
      tpu.vector_store %arg7[%c0_19, %c1_20], %38 {strides = array<i32>} : memref<32x8xf32, #tpu.memory_space<vmem>>, vector<32x1xf32>,
      %c0_i32_21 = arith.constant 0 : i32
      %40 = arith.cmpi eq, %arg1, %c0_i32_21 : i32
      %41 = arith.extui %40 : i1 to i32
      %c0_i32_22 = arith.constant 0 : i32
      %42 = arith.cmpi ne, %41, %c0_i32_22 : i32
      scf.if %42 {
        %c0_23 = arith.constant 0 : index
        %c0_24 = arith.constant 0 : index
        %43 = vector.load %arg7[%c0_23, %c0_24] : memref<32x8xf32, #tpu.memory_space<vmem>>, vector<32x1xf32>
        %cst_25 = arith.constant 5.000000e-03 : f32
        %44 = vector.broadcast %cst_25 : f32 to vector<32x1xf32>
        %45 = arith.mulf %43, %44 : vector<32x1xf32>
        %c0_26 = arith.constant 0 : index
        %c1_27 = arith.constant 1 : index
        %46 = vector.load %arg7[%c0_26, %c1_27] : memref<32x8xf32, #tpu.memory_space<vmem>>, vector<32x1xf32>
        %cst_28 = arith.constant 5.000000e-03 : f32
        %47 = vector.broadcast %cst_28 : f32 to vector<32x1xf32>
        %48 = arith.mulf %46, %47 : vector<32x1xf32>
        %49 = arith.mulf %45, %45 : vector<32x1xf32>
        %50 = arith.subf %48, %49 : vector<32x1xf32>
        %cst_29 = arith.constant 0.000000e+00 : f32
        %51 = vector.broadcast %cst_29 : f32 to vector<32x1xf32>
        %52 = arith.maximumf %50, %51 : vector<32x1xf32>
        %c0_30 = arith.constant 0 : index
        %c2 = arith.constant 2 : index
        %53 = vector.load %arg5[%c0_30, %c2] : memref<32x8xf32, #tpu.memory_space<vmem>>, vector<32x1xf32>
        %cst_31 = arith.constant 9.99999974E-6 : f32
        %54 = vector.broadcast %cst_31 : f32 to vector<32x1xf32>
        %55 = arith.addf %52, %54 : vector<32x1xf32>
        %56 = math.rsqrt %55 : vector<32x1xf32>
        %57 = arith.mulf %53, %56 : vector<32x1xf32>
        %c0_32 = arith.constant 0 : index
        %c0_33 = arith.constant 0 : index
        %58 = vector.load %arg6[%c0_32, %c0_33] : memref<32x8xf32, #tpu.memory_space<vmem>>, vector<32x1xf32>
        tpu.vector_store %arg6[%c0_32, %c0_33], %57 {strides = array<i32>} : memref<32x8xf32, #tpu.memory_space<vmem>>, vector<32x1xf32>,
        %c0_34 = arith.constant 0 : index
        %c3 = arith.constant 3 : index
        %59 = vector.load %arg5[%c0_34, %c3] : memref<32x8xf32, #tpu.memory_space<vmem>>, vector<32x1xf32>
        %60 = arith.mulf %45, %57 : vector<32x1xf32>
        %61 = arith.subf %59, %60 : vector<32x1xf32>
        %c0_35 = arith.constant 0 : index
        %c1_36 = arith.constant 1 : index
        %62 = vector.load %arg6[%c0_35, %c1_36] : memref<32x8xf32, #tpu.memory_space<vmem>>, vector<32x1xf32>
        tpu.vector_store %arg6[%c0_35, %c1_36], %61 {strides = array<i32>} : memref<32x8xf32, #tpu.memory_space<vmem>>, vector<32x1xf32>,
      } else {
      }
    } else {
    }
    %c1_i32 = arith.constant 1 : i32
    %22 = arith.cmpi eq, %arg0, %c1_i32 : i32
    %23 = arith.extui %22 : i1 to i32
    %c0_i32_10 = arith.constant 0 : i32
    %24 = arith.cmpi ne, %23, %c0_i32_10 : i32
    scf.if %24 {
      %c0_11 = arith.constant 0 : index
      %c0_12 = arith.constant 0 : index
      %25 = vector.load %arg6[%c0_11, %c0_12] : memref<32x8xf32, #tpu.memory_space<vmem>>, vector<32x1xf32>
      %26 = vector.broadcast %25 : vector<32x1xf32> to vector<32x256xf32>
      %27 = arith.mulf %12, %26 : vector<32x256xf32>
      %c0_13 = arith.constant 0 : index
      %c1 = arith.constant 1 : index
      %28 = vector.load %arg6[%c0_13, %c1] : memref<32x8xf32, #tpu.memory_space<vmem>>, vector<32x1xf32>
      %29 = vector.broadcast %28 : vector<32x1xf32> to vector<32x256xf32>
      %30 = arith.addf %27, %29 : vector<32x256xf32>
      %c0_14 = arith.constant 0 : index
      %c0_15 = arith.constant 0 : index
      %31 = vector.load %arg4[%c0_14, %c0_15] : memref<16x32xf32, #tpu.memory_space<vmem>>, vector<16x32xf32>
      %cst_16 = arith.constant dense<0.000000e+00> : vector<16x256xf32>
      %32 = tpu.matmul %31, %30, %cst_16 {dimension_numbers = #tpu.dot_dimension_numbers<[1], [0], [0], [1], [0, 0, 1, 1], [], []>} : vector<16x32xf32>, vector<32x256xf32>, vector<16x256xf32> -> vector<16x256xf32>
      %c0_17 = arith.constant 0 : index
      %c1_18 = arith.constant 1 : index
      %33 = vector.load %arg5[%c0_17, %c1_18] : memref<32x8xf32, #tpu.memory_space<vmem>>, vector<16x1xf32>
      %34 = vector.broadcast %33 : vector<16x1xf32> to vector<16x256xf32>
      %35 = arith.addf %32, %34 : vector<16x256xf32>
      %cst_19 = arith.constant 0.000000e+00 : f32
      %36 = vector.broadcast %cst_19 : f32 to vector<16x256xf32>
      %37 = arith.maximumf %35, %36 : vector<16x256xf32>
      %cst_20 = arith.constant 0.000000e+00 : f32
      %38 = vector.shape_cast %18 : vector<1x256xi1> to vector<1x256xi1>
      %39 = vector.broadcast %38 : vector<1x256xi1> to vector<16x256xi1>
      %40 = vector.broadcast %cst_20 : f32 to vector<16x256xf32>
      %41 = arith.select %39, %37, %40 : vector<16x256xi1>, vector<16x256xf32>
      %c0_21 = arith.constant 0 : index
      %c2 = arith.constant 2 : index
      %42 = vector.load %arg7[%c0_21, %c2] : memref<32x8xf32, #tpu.memory_space<vmem>>, vector<16x1xf32>
      %cst_22 = arith.constant dense<0.000000e+00> : vector<16xf32>
      %43 = vector.multi_reduction <add>, %41, %cst_22 [1] : vector<16x256xf32> to vector<16xf32>
      %44 = vector.shape_cast %43 : vector<16xf32> to vector<16x1xf32>
      %45 = arith.addf %42, %44 : vector<16x1xf32>
      %c0_23 = arith.constant 0 : index
      %c2_24 = arith.constant 2 : index
      %46 = vector.load %arg7[%c0_23, %c2_24] : memref<32x8xf32, #tpu.memory_space<vmem>>, vector<16x1xf32>
      tpu.vector_store %arg7[%c0_23, %c2_24], %45 {strides = array<i32>} : memref<32x8xf32, #tpu.memory_space<vmem>>, vector<16x1xf32>,
      %c0_25 = arith.constant 0 : index
      %c3 = arith.constant 3 : index
      %47 = vector.load %arg7[%c0_25, %c3] : memref<32x8xf32, #tpu.memory_space<vmem>>, vector<16x1xf32>
      %48 = arith.mulf %41, %41 : vector<16x256xf32>
      %cst_26 = arith.constant dense<0.000000e+00> : vector<16xf32>
      %49 = vector.multi_reduction <add>, %48, %cst_26 [1] : vector<16x256xf32> to vector<16xf32>
      %50 = vector.shape_cast %49 : vector<16xf32> to vector<16x1xf32>
      %51 = arith.addf %47, %50 : vector<16x1xf32>
      %c0_27 = arith.constant 0 : index
      %c3_28 = arith.constant 3 : index
      %52 = vector.load %arg7[%c0_27, %c3_28] : memref<32x8xf32, #tpu.memory_space<vmem>>, vector<16x1xf32>
      tpu.vector_store %arg7[%c0_27, %c3_28], %51 {strides = array<i32>} : memref<32x8xf32, #tpu.memory_space<vmem>>, vector<16x1xf32>,
      %c0_i32_29 = arith.constant 0 : i32
      %53 = arith.cmpi eq, %arg1, %c0_i32_29 : i32
      %54 = arith.extui %53 : i1 to i32
      %c0_i32_30 = arith.constant 0 : i32
      %55 = arith.cmpi ne, %54, %c0_i32_30 : i32
      scf.if %55 {
        %c0_31 = arith.constant 0 : index
        %c2_32 = arith.constant 2 : index
        %56 = vector.load %arg7[%c0_31, %c2_32] : memref<32x8xf32, #tpu.memory_space<vmem>>, vector<16x1xf32>
        %cst_33 = arith.constant 5.000000e-03 : f32
        %57 = vector.broadcast %cst_33 : f32 to vector<16x1xf32>
        %58 = arith.mulf %56, %57 : vector<16x1xf32>
        %c0_34 = arith.constant 0 : index
        %c3_35 = arith.constant 3 : index
        %59 = vector.load %arg7[%c0_34, %c3_35] : memref<32x8xf32, #tpu.memory_space<vmem>>, vector<16x1xf32>
        %cst_36 = arith.constant 5.000000e-03 : f32
        %60 = vector.broadcast %cst_36 : f32 to vector<16x1xf32>
        %61 = arith.mulf %59, %60 : vector<16x1xf32>
        %62 = arith.mulf %58, %58 : vector<16x1xf32>
        %63 = arith.subf %61, %62 : vector<16x1xf32>
        %cst_37 = arith.constant 0.000000e+00 : f32
        %64 = vector.broadcast %cst_37 : f32 to vector<16x1xf32>
        %65 = arith.maximumf %63, %64 : vector<16x1xf32>
        %c0_38 = arith.constant 0 : index
        %c4 = arith.constant 4 : index
        %66 = vector.load %arg5[%c0_38, %c4] : memref<32x8xf32, #tpu.memory_space<vmem>>, vector<16x1xf32>
        %cst_39 = arith.constant 9.99999974E-6 : f32
        %67 = vector.broadcast %cst_39 : f32 to vector<16x1xf32>
        %68 = arith.addf %65, %67 : vector<16x1xf32>
        %69 = math.rsqrt %68 : vector<16x1xf32>
        %70 = arith.mulf %66, %69 : vector<16x1xf32>
        %c0_40 = arith.constant 0 : index
        %c2_41 = arith.constant 2 : index
        %71 = vector.load %arg6[%c0_40, %c2_41] : memref<32x8xf32, #tpu.memory_space<vmem>>, vector<16x1xf32>
        tpu.vector_store %arg6[%c0_40, %c2_41], %70 {strides = array<i32>} : memref<32x8xf32, #tpu.memory_space<vmem>>, vector<16x1xf32>,
        %c0_42 = arith.constant 0 : index
        %c5 = arith.constant 5 : index
        %72 = vector.load %arg5[%c0_42, %c5] : memref<32x8xf32, #tpu.memory_space<vmem>>, vector<16x1xf32>
        %73 = arith.mulf %58, %70 : vector<16x1xf32>
        %74 = arith.subf %72, %73 : vector<16x1xf32>
        %c0_43 = arith.constant 0 : index
        %c3_44 = arith.constant 3 : index
        %75 = vector.load %arg6[%c0_43, %c3_44] : memref<32x8xf32, #tpu.memory_space<vmem>>, vector<16x1xf32>
        tpu.vector_store %arg6[%c0_43, %c3_44], %74 {strides = array<i32>} : memref<32x8xf32, #tpu.memory_space<vmem>>, vector<16x1xf32>,
      } else {
      }
    } else {
    }
    return
  }
  func.func @transform_0(%arg0: i32, %arg1: i32) -> (i32, i32) {
    %c0_i32 = arith.constant 0 : i32
    %c0_i32_0 = arith.constant 0 : i32
    return %c0_i32, %arg1 : i32, i32
  }
  func.func @transform_1(%arg0: i32, %arg1: i32) -> (i32, i32) {
    %c0_i32 = arith.constant 0 : i32
    %c0_i32_0 = arith.constant 0 : i32
    %c0_i32_1 = arith.constant 0 : i32
    return %c0_i32, %c0_i32_0 : i32, i32
  }
  func.func @transform_2(%arg0: i32, %arg1: i32) -> (i32, i32) {
    %c0_i32 = arith.constant 0 : i32
    %c0_i32_0 = arith.constant 0 : i32
    %c0_i32_1 = arith.constant 0 : i32
    return %c0_i32, %c0_i32_0 : i32, i32
  }
  func.func @transform_3(%arg0: i32, %arg1: i32) -> (i32, i32) {
    %c0_i32 = arith.constant 0 : i32
    %c0_i32_0 = arith.constant 0 : i32
    %c0_i32_1 = arith.constant 0 : i32
    return %c0_i32, %c0_i32_0 : i32, i32
  }
  func.func @transform_4(%arg0: i32, %arg1: i32) -> (i32, i32) {
    %c0_i32 = arith.constant 0 : i32
    %c0_i32_0 = arith.constant 0 : i32
    %c0_i32_1 = arith.constant 0 : i32
    return %c0_i32, %c0_i32_0 : i32, i32
  }
}

</mosaic_0001>

<llo_original>
// kernel: tpu_custom_call.1
$region0: #{tpu_custom_call.1}
  #allocation0 [shape = 'u32[]', space=smem, size = 0x4, offset = 0x4, fixed_abs, tag = 'smem constant byte address 0x4 - core index']
  #allocation1 [shape = 'u32[72,128]{1,0:T(1,128)}', space=vmem, size = 0x9000, scoped, tag = 'internal scratch']
  #allocation2 [shape = 'f32[32,8]{1,0:T(8,128)}', space=vmem, size = 0x4000, scoped, tag = 'scratch operand']
  %s0 = inlined_call_operand.vmem [shape: f32[12,256], index: 0, kind: input, shape index: {}]
  %s1 = inlined_call_operand.vmem [shape: f32[32,12], index: 1, kind: input, shape index: {}]
  %s2 = inlined_call_operand.vmem [shape: f32[16,32], index: 2, kind: input, shape index: {}]
  %s3 = inlined_call_operand.vmem [shape: f32[32,8], index: 3, kind: input, shape index: {}]
  %s4 = inlined_call_operand.vmem [shape: f32[32,8], index: 4, kind: output, shape index: {}]
  %s5 = sld [smem:[#allocation0]]
  $region69: #{tpu_custom_call.1} parent=0
    _
  %s7 = ssub.s32 1, %s5
  %s8 = scalar_select 0, %s7, %s5
  loop: start=0, step=1, limit=4
  $region2: #{tpu_custom_call.1} parent=0 // loop_pre_header
    _
  $region3: #{tpu_custom_call.1} parent=0 // loop_header
    %s10 = sphi 0, %s14
    %p11 = scmp.ge.s32.totalorder %s10, 4
    %s17 = sphi 0, %s29
    %s18 = sphi 0, %s25
    %s19 = sphi 0, %s17
    %s20 = sphi 0, %s18
    %s21 = sphi 0, %s19
    %s22 = sphi 0, %s20
    %s32 = sphi 0, %s34
    %s35 = sphi 0, %s32
    %s36 = sphi 0, %s35
    %s52 = sphi 0, %s36
    %s56 = sphi 0, %s56
    %s58 = sphi 0, %s56
    %s59 = sphi 0, %s58
    %s73 = sphi 0, %s59
    %s77 = sphi 0, %s77
    %s79 = sphi 0, %s77
    %s80 = sphi 0, %s79
    %s94 = sphi 0, %s80
    %s98 = sphi 0, %s98
    %s100 = sphi 0, %s98
    %s101 = sphi 0, %s100
    %s115 = sphi 0, %s101
    %s119 = sphi 0, %s119
    %s121 = sphi 0, %s119
    %s122 = sphi 0, %s121
    %s136 = sphi 0, %s122
  $region4: #{tpu_custom_call.1} parent=0 // loop_header_branch
    %13 = sbr.rel (%p11) target = $region8
  $region5: #{tpu_custom_call.1} parent=0 // loop_body
    %s15 = ssub.s32 %s10, 1
    %s16 = ssub.s32 %s10, 2
    %s23 = sadd.s32 1, %s18
    %p24 = scmp.ge.s32.totalorder %s23, 1
    %s25 = scalar_select %p24, 0, %s23
    %s26 = sadd.s32 1, %s17
    %s27 = scalar_select %p24, %s26, %s17
    %p28 = scmp.ge.s32.totalorder %s27, 2
    %s29 = scalar_select %p28, 0, %s27
    %s30 = ssub.s32 %s18, %s25
    %p31 = scmp.eq.s32.totalorder %s30, 0
    %s33 = sadd.s32 %s32, 1
    %s34 = scalar_select %p31, %s32, %s33
    %p37 = pneg %p31
    %p38 = scmp.eq.s32.totalorder %s10, 1
    %p39 = por %p37, %p38
    %p40 = scmp.ne.s32.totalorder %s32, %s35
    %p41 = scmp.eq.s32.totalorder %s10, 0
    %p42 = por %p40, %p41
    %p43 = scmp.ne.s32.totalorder %s32, %s35
    %p44 = scmp.eq.s32.totalorder %s15, 1
    %p45 = por %p43, %p44
    %p46 = scmp.ne.s32.totalorder %s35, %s36
    %p47 = scmp.eq.s32.totalorder %s15, 0
    %p48 = por %p46, %p47
    %p49 = scmp.ne.s32.totalorder %s35, %s36
    %p50 = scmp.eq.s32.totalorder %s16, 1
    %p51 = por %p49, %p50
    %p53 = scmp.ne.s32.totalorder %s36, %s52
    %p54 = scmp.eq.s32.totalorder %s16, 0
    %p55 = por %p53, %p54
    %s57 = sadd.s32 %s56, 1
    %p60 = scmp.eq.s32.totalorder %s10, 1
    %p61 = scmp.ne.s32.totalorder %s56, %s58
    %p62 = scmp.eq.s32.totalorder %s10, 0
    %p63 = por %p61, %p62
    %p64 = scmp.ne.s32.totalorder %s56, %s58
    %p65 = scmp.eq.s32.totalorder %s15, 1
    %p66 = por %p64, %p65
    %p67 = scmp.ne.s32.totalorder %s58, %s59
    %p68 = scmp.eq.s32.totalorder %s15, 0
    %p69 = por %p67, %p68
    %p70 = scmp.ne.s32.totalorder %s58, %s59
    %p71 = scmp.eq.s32.totalorder %s16, 1
    %p72 = por %p70, %p71
    %p74 = scmp.ne.s32.totalorder %s59, %s73
    %p75 = scmp.eq.s32.totalorder %s16, 0
    %p76 = por %p74, %p75
    %s78 = sadd.s32 %s77, 1
    %p81 = scmp.eq.s32.totalorder %s10, 1
    %p82 = scmp.ne.s32.totalorder %s77, %s79
    %p83 = scmp.eq.s32.totalorder %s10, 0
    %p84 = por %p82, %p83
    %p85 = scmp.ne.s32.totalorder %s77, %s79
    %p86 = scmp.eq.s32.totalorder %s15, 1
    %p87 = por %p85, %p86
    %p88 = scmp.ne.s32.totalorder %s79, %s80
    %p89 = scmp.eq.s32.totalorder %s15, 0
    %p90 = por %p88, %p89
    %p91 = scmp.ne.s32.totalorder %s79, %s80
    %p92 = scmp.eq.s32.totalorder %s16, 1
    %p93 = por %p91, %p92
    %p95 = scmp.ne.s32.totalorder %s80, %s94
    %p96 = scmp.eq.s32.totalorder %s16, 0
    %p97 = por %p95, %p96
    %s99 = sadd.s32 %s98, 1
    %p102 = scmp.eq.s32.totalorder %s10, 1
    %p103 = scmp.ne.s32.totalorder %s98, %s100
    %p104 = scmp.eq.s32.totalorder %s10, 0
    %p105 = por %p103, %p104
    %p106 = scmp.ne.s32.totalorder %s98, %s100
    %p107 = scmp.eq.s32.totalorder %s15, 1
    %p108 = por %p106, %p107
    %p109 = scmp.ne.s32.totalorder %s100, %s101
    %p110 = scmp.eq.s32.totalorder %s15, 0
    %p111 = por %p109, %p110
    %p112 = scmp.ne.s32.totalorder %s100, %s101
    %p113 = scmp.eq.s32.totalorder %s16, 1
    %p114 = por %p112, %p113
    %p116 = scmp.ne.s32.totalorder %s101, %s115
    %p117 = scmp.eq.s32.totalorder %s16, 0
    %p118 = por %p116, %p117
    %s120 = sadd.s32 %s119, 1
    %p123 = scmp.eq.s32.totalorder %s10, 1
    %p124 = scmp.ne.s32.totalorder %s119, %s121
    %p125 = scmp.eq.s32.totalorder %s10, 0
    %p126 = por %p124, %p125
    %p127 = scmp.ne.s32.totalorder %s119, %s121
    %p128 = scmp.eq.s32.totalorder %s15, 1
    %p129 = por %p127, %p128
    %p130 = scmp.ne.s32.totalorder %s121, %s122
    %p131 = scmp.eq.s32.totalorder %s15, 0
    %p132 = por %p130, %p131
    %p133 = scmp.ne.s32.totalorder %s121, %s122
    %p134 = scmp.eq.s32.totalorder %s16, 1
    %p135 = por %p133, %p134
    %p137 = scmp.ne.s32.totalorder %s122, %s136
    %p138 = scmp.eq.s32.totalorder %s16, 0
    %p139 = por %p137, %p138
    %p140 = scmp.le.s32.totalorder 1, %s10
    %p141 = scmp.lt.s32.totalorder %s10, 3
    %p142 = pnand %p140, %p141
    %p143 = pneg %p142
    // Predicated region
    $region9: #{tpu_custom_call.1} parent=5 // pred_check
      _
    $region10: #{tpu_custom_call.1} parent=5 // pred_check_branch
      %145 = sbr.rel (%p142) target = $region12
    $region11: #{tpu_custom_call.1} parent=5 // pred_region
      %s146 = ssub.s32 %s10, 1
      // Predicated region
      $region13: #{tpu_custom_call.1} parent=11 // pred_check
        %p147 = pneg %p48
      $region14: #{tpu_custom_call.1} parent=11 // pred_check_branch
        %149 = sbr.rel (%p147) target = $region16
      $region15: #{tpu_custom_call.1} parent=11 // pred_region
        %s150 = smul.u32 2, %s20
        %p151 = scmp.lt.s32.totalorder %s150, 1
        %s152 = scalar_select %p151, %s150, 1
        %s153 = smul.addr %s152, 8
        %s154 = scalar_lea.vmem %s0, %s153
        %s155 = smul.u32 2, %s20
      $region16: #{tpu_custom_call.1} parent=11 // pred_fallthru
        _
      // Predicated region
      $region17: #{tpu_custom_call.1} parent=11 // pred_check
        %p156 = pneg %p69
      $region18: #{tpu_custom_call.1} parent=11 // pred_check_branch
        %158 = sbr.rel (%p156) target = $region20
      $region19: #{tpu_custom_call.1} parent=11 // pred_region
        _
      $region20: #{tpu_custom_call.1} parent=11 // pred_fallthru
        _
      // Predicated region
      $region21: #{tpu_custom_call.1} parent=11 // pred_check
        %p159 = pneg %p90
      $region22: #{tpu_custom_call.1} parent=11 // pred_check_branch
        %161 = sbr.rel (%p159) target = $region24
      $region23: #{tpu_custom_call.1} parent=11 // pred_region
        _
      $region24: #{tpu_custom_call.1} parent=11 // pred_fallthru
        _
      // Predicated region
      $region25: #{tpu_custom_call.1} parent=11 // pred_check
        %p162 = pneg %p111
      $region26: #{tpu_custom_call.1} parent=11 // pred_check_branch
        %164 = sbr.rel (%p162) target = $region28
      $region27: #{tpu_custom_call.1} parent=11 // pred_region
        _
      $region28: #{tpu_custom_call.1} parent=11 // pred_fallthru
        _
    $region12: #{tpu_custom_call.1} parent=5 // pred_fallthru
      _
    %p165 = scmp.lt.s32.totalorder %s10, 2
    // Predicated region
    $region29: #{tpu_custom_call.1} parent=5 // pred_check
      %p166 = pneg %p165
    $region30: #{tpu_custom_call.1} parent=5 // pred_check_branch
      %168 = sbr.rel (%p166) target = $region32
    $region31: #{tpu_custom_call.1} parent=5 // pred_region
      _
    $region32: #{tpu_custom_call.1} parent=5 // pred_fallthru
      _
    %p169 = scmp.le.s32.totalorder 1, %s10
    %p170 = scmp.lt.s32.totalorder %s10, 3
    %p171 = pnand %p169, %p170
    %p172 = pneg %p171
    // Predicated region
    $region33: #{tpu_custom_call.1} parent=5 // pred_check
      _
    $region34: #{tpu_custom_call.1} parent=5 // pred_check_branch
      %174 = sbr.rel (%p171) target = $region36
    $region35: #{tpu_custom_call.1} parent=5 // pred_region
      %s175 = ssub.s32 %s10, 1
      %s176 = smul.u32 2, %s20
      %p177 = scmp.lt.s32.totalorder %s176, 1
      %s178 = scalar_select %p177, %s176, 1
      %s179 = smul.addr %s178, 8
      %s180 = scalar_lea.vmem %s0, %s179
      %p181 = pneg %p48
      %p182 = pneg %p45
      %p183 = pneg %p69
      %p184 = pneg %p66
      %p185 = pneg %p90
      %p186 = pneg %p87
      %p187 = pneg %p111
      %p188 = pneg %p108
      %p189 = pneg %p132
      %p190 = pneg %p129
      %s191 = smul.u32 2, %s20
      %p192 = scmp.lt.s32.totalorder %s191, 1
      %s193 = scalar_select %p192, %s191, 1
      %s194 = smul.addr %s193, 8
      %s195 = scalar_lea.vmem %s0, %s194
      %s196 = smul.u32 2, %s20
      %p197 = scmp.eq.s32.totalorder %s19, 0
      %p198 = scmp.eq.s32.totalorder %s20, 0
      %p199 = pnand %p197, %p198
      %p200 = pneg %p199
      // Predicated region
      $region37: #{tpu_custom_call.1} parent=35 // pred_check
        _
      $region38: #{tpu_custom_call.1} parent=35 // pred_check_branch
        %202 = sbr.rel (%p199) target = $region40
      $region39: #{tpu_custom_call.1} parent=35 // pred_region
        %vm203 = vcmask 64512
        %204 = vst.msk [vmem:[#allocation2] sm:$0xff] %vm203, 0.0
        %205 = vst.msk [vmem:[#allocation2 + $0x8] sm:$0xff] %vm203, 0.0
        %206 = vst.msk [vmem:[#allocation2 + $0x10] sm:$0xff] %vm203, 0.0
        %207 = vst.msk [vmem:[#allocation2 + $0x18] sm:$0xff] %vm203, 0.0
        %208 = vst.msk [vmem:[%s4] sm:$0xff] %vm203, 0.0
        %209 = vst.msk [vmem:[%s4 + $0x8] sm:$0xff] %vm203, 0.0
        %210 = vst.msk [vmem:[%s4 + $0x10] sm:$0xff] %vm203, 0.0
        %211 = vst.msk [vmem:[%s4 + $0x18] sm:$0xff] %vm203, 0.0
      $region40: #{tpu_custom_call.1} parent=35 // pred_fallthru
        _
      %v212 = vld [vmem:[%s1] sm:$0xff]
      %v213 = vld [vmem:[%s1 + $0x8] sm:$0xff]
      %v214 = vld [vmem:[%s1 + $0x10] sm:$0xff]
      %v215 = vld [vmem:[%s1 + $0x18] sm:$0xff]
      %v216 = vld [vmem:[%s195] sm:$0xff]
      %v217 = vld [vmem:[%s195 + $0x8] sm:$0xff]
      %v218 = vld [vmem:[%s195 + $0x10] sm:$0xf]
      %v219 = vld [vmem:[%s195 + $0x18] sm:$0xf]
      %v220 = vld [vmem:[%s3] sm:$0xff]
      %v221 = vld [vmem:[%s3 + $0x8] sm:$0xff]
      %v222 = vld [vmem:[%s3 + $0x10] sm:$0xff]
      %v223 = vld [vmem:[%s3 + $0x18] sm:$0xff]
      %225 = vset.pattern.permute.xlu0 0
      %226 = vperm.xlu0 %225, %v220
      %v227 = vpop.permute.xlu0 %226
      %230 = vset.pattern.permute.xlu0 0
      %231 = vperm.xlu0 %230, %v221
      %v232 = vpop.permute.xlu0 %231
      %235 = vset.pattern.permute.xlu0 0
      %236 = vperm.xlu0 %235, %v222
      %v237 = vpop.permute.xlu0 %236
      %240 = vset.pattern.permute.xlu0 0
      %241 = vperm.xlu0 %240, %v223
      %v242 = vpop.permute.xlu0 %241
      %vm244 = vcmask 97280
      %v246 = vsel %vm244, %v212, 0
      %v249 = vsel %vm244, %v213, 0
      %v252 = vsel %vm244, %v214, 0
      %v255 = vsel %vm244, %v215, 0
      %vm257 = vcmask 1043456
      %v259 = vsel %vm257, %v218, 0
      %v262 = vsel %vm257, %v219, 0
      %264 = vmatpush.msra.mxu0 0.0
      %265 = vmatpush.msra.mxu0 0.0
      %266 = vmatpush.msra.mxu0 0.0
      %267 = vmatpush.msra.mxu0 0.0
      %268 = vmatpush.msra.mxu0 0.0
      %269 = vmatpush.msra.mxu0 0.0
      %270 = vmatpush.msra.mxu0 0.0
      %271 = vmatpush.msra.mxu0 0.0
      %272 = vmatpush.msra.mxu0 0.0
      %273 = vmatpush.msra.mxu0 0.0
      %274 = vmatpush.msra.mxu0 0.0
      %275 = vmatpush.msra.mxu0 0.0
      %276 = vmatpush.msra.mxu0 0.0
      %277 = vmatpush.msra.mxu0 0.0
      %278 = vmatpush.msra.mxu0 %v259
      %279 = vmatpush.msra.mxu0 %v216
      %280 = vmatmul.f32.gmra.mxu0 %v246
      %v281 = vpop.f32.mrf.mxu0
      %v282 = vadd.f32 %v227, %v281
      %283 = vmatmul.f32.gmra.mxu0 %v249
      %v284 = vpop.f32.mrf.mxu0
      %v285 = vadd.f32 %v232, %v284
      %286 = vmatmul.f32.gmra.mxu0 %v252
      %v287 = vpop.f32.mrf.mxu0
      %v288 = vadd.f32 %v237, %v287
      %289 = vmatmul.f32.gmra.mxu0 %v255
      %v290 = vpop.f32.mrf.mxu0
      %v291 = vadd.f32 %v242, %v290
      %292 = vdwg.mxu0
      %293 = vmatpush.msra.mxu0 0.0
      %294 = vmatpush.msra.mxu0 0.0
      %295 = vmatpush.msra.mxu0 0.0
      %296 = vmatpush.msra.mxu0 0.0
      %297 = vmatpush.msra.mxu0 0.0
      %298 = vmatpush.msra.mxu0 0.0
      %299 = vmatpush.msra.mxu0 0.0
      %300 = vmatpush.msra.mxu0 0.0
      %301 = vmatpush.msra.mxu0 0.0
      %302 = vmatpush.msra.mxu0 0.0
      %303 = vmatpush.msra.mxu0 0.0
      %304 = vmatpush.msra.mxu0 0.0
      %305 = vmatpush.msra.mxu0 0.0
      %306 = vmatpush.msra.mxu0 0.0
      %307 = vmatpush.msra.mxu0 %v262
      %308 = vmatpush.msra.mxu0 %v217
      %309 = vmatmul.f32.gmra.mxu0 %v246
      %v310 = vpop.f32.mrf.mxu0
      %v311 = vadd.f32 %v227, %v310
      %312 = vmatmul.f32.gmra.mxu0 %v249
      %v313 = vpop.f32.mrf.mxu0
      %v314 = vadd.f32 %v232, %v313
      %315 = vmatmul.f32.gmra.mxu0 %v252
      %v316 = vpop.f32.mrf.mxu0
      %v317 = vadd.f32 %v237, %v316
      %318 = vmatmul.f32.gmra.mxu0 %v255
      %v319 = vpop.f32.mrf.mxu0
      %v320 = vadd.f32 %v242, %v319
      %321 = vdwg.mxu0
      %v322 = vmax.f32 %v282, 0.0
      %v323 = vmax.f32 %v311, 0.0
      %v324 = vmax.f32 %v285, 0.0
      %v325 = vmax.f32 %v314, 0.0
      %v326 = vmax.f32 %v288, 0.0
      %v327 = vmax.f32 %v317, 0.0
      %v328 = vmax.f32 %v291, 0.0
      %v329 = vmax.f32 %v320, 0.0
      %v330 = vlaneseq
      %v331 = vand.u32 %v330, 127
      %v332 = vadd.s32 %v331, 128
      %s333 = smul.u32 %s20, 256
      %v334 = vstv %s333
      %v335 = vadd.s32 %v331, %v334
      %v336 = vadd.s32 %v332, %v334
      %vm337 = vcmp.lt.s32.totalorder %v335, 200
      %vm338 = vcmp.lt.s32.totalorder %v336, 200
      // Predicated region
      $region41: #{tpu_custom_call.1} parent=35 // pred_check
        %p339 = pneg %p197
      $region42: #{tpu_custom_call.1} parent=35 // pred_check_branch
        %341 = sbr.rel (%p339) target = $region44
      $region43: #{tpu_custom_call.1} parent=35 // pred_region
        %v342 = vsel %vm337, 1, 0
        %v343 = vsel %vm338, 1, 0
        %vm344 = vcmp.eq.s32.totalorder %v342, 1
        %vm345 = vcmp.eq.s32.totalorder %v343, 1
        %v346 = vsel %vm344, %v322, 0.0
        %v347 = vsel %vm345, %v323, 0.0
        %v348 = vsel %vm344, %v324, 0.0
        %v349 = vsel %vm345, %v325, 0.0
        %v350 = vsel %vm344, %v326, 0.0
        %v351 = vsel %vm345, %v327, 0.0
        %v352 = vsel %vm344, %v328, 0.0
        %v353 = vsel %vm345, %v329, 0.0
        %v354 = vld [vmem:[#allocation2] sm:$0xff]
        %v355 = vld [vmem:[#allocation2 + $0x8] sm:$0xff]
        %v356 = vld [vmem:[#allocation2 + $0x10] sm:$0xff]
        %v357 = vld [vmem:[#allocation2 + $0x18] sm:$0xff]
        %v358 = vadd.f32 %v346, %v347
        %359 = vadd.xlane.f32.xlu0 %v358
        %v360 = vpop.xlane.xlu0 %359
        %v361 = vadd.f32 %v348, %v349
        %362 = vadd.xlane.f32.xlu0 %v361
        %v363 = vpop.xlane.xlu0 %362
        %v364 = vadd.f32 %v350, %v351
        %365 = vadd.xlane.f32.xlu0 %v364
        %v366 = vpop.xlane.xlu0 %365
        %v367 = vadd.f32 %v352, %v353
        %368 = vadd.xlane.f32.xlu0 %v367
        %v369 = vpop.xlane.xlu0 %368
        %v370 = vadd.f32 %v354, %v360
        %v371 = vadd.f32 %v355, %v363
        %v372 = vadd.f32 %v356, %v366
        %v373 = vadd.f32 %v357, %v369
        %vm374 = vcmask 7168
        %375 = vst.msk [vmem:[#allocation2] sm:$0xff] %vm374, %v370
        %376 = vst.msk [vmem:[#allocation2 + $0x8] sm:$0xff] %vm374, %v371
        %377 = vst.msk [vmem:[#allocation2 + $0x10] sm:$0xff] %vm374, %v372
        %378 = vst.msk [vmem:[#allocation2 + $0x18] sm:$0xff] %vm374, %v373
        %v379 = vld [vmem:[#allocation2] sm:$0xff]
        %v380 = vld [vmem:[#allocation2 + $0x8] sm:$0xff]
        %v381 = vld [vmem:[#allocation2 + $0x10] sm:$0xff]
        %v382 = vld [vmem:[#allocation2 + $0x18] sm:$0xff]
        %v383 = vmul.f32 %v346, %v346
        %v384 = vmul.f32 %v347, %v347
        %v385 = vmul.f32 %v348, %v348
        %v386 = vmul.f32 %v349, %v349
        %v387 = vmul.f32 %v350, %v350
        %v388 = vmul.f32 %v351, %v351
        %v389 = vmul.f32 %v352, %v352
        %v390 = vmul.f32 %v353, %v353
        %v391 = vadd.f32 %v383, %v384
        %392 = vadd.xlane.f32.xlu0 %v391
        %v393 = vpop.xlane.xlu0 %392
        %v394 = vadd.f32 %v385, %v386
        %395 = vadd.xlane.f32.xlu0 %v394
        %v396 = vpop.xlane.xlu0 %395
        %v397 = vadd.f32 %v387, %v388
        %398 = vadd.xlane.f32.xlu0 %v397
        %v399 = vpop.xlane.xlu0 %398
        %v400 = vadd.f32 %v389, %v390
        %401 = vadd.xlane.f32.xlu0 %v400
        %v402 = vpop.xlane.xlu0 %401
        %v403 = vadd.f32 %v379, %v393
        %v404 = vadd.f32 %v380, %v396
        %v405 = vadd.f32 %v381, %v399
        %v406 = vadd.f32 %v382, %v402
        %vm407 = vcmask 15368
        %408 = vst.msk [vmem:[#allocation2] sm:$0xff] %vm407, %v403
        %409 = vst.msk [vmem:[#allocation2 + $0x8] sm:$0xff] %vm407, %v404
        %410 = vst.msk [vmem:[#allocation2 + $0x10] sm:$0xff] %vm407, %v405
        %411 = vst.msk [vmem:[#allocation2 + $0x18] sm:$0xff] %vm407, %v406
        // Predicated region
        $region45: #{tpu_custom_call.1} parent=43 // pred_check
          %p412 = pneg %p198
        $region46: #{tpu_custom_call.1} parent=43 // pred_check_branch
          %414 = sbr.rel (%p412) target = $region48
        $region47: #{tpu_custom_call.1} parent=43 // pred_region
          %v415 = vld [vmem:[#allocation2] sm:$0xff]
          %v416 = vld [vmem:[#allocation2 + $0x8] sm:$0xff]
          %v417 = vld [vmem:[#allocation2 + $0x10] sm:$0xff]
          %v418 = vld [vmem:[#allocation2 + $0x18] sm:$0xff]
          %v419 = vmul.f32 %v415, 0.005
          %v420 = vmul.f32 %v416, 0.005
          %v421 = vmul.f32 %v417, 0.005
          %v422 = vmul.f32 %v418, 0.005
          %v423 = vmul.f32 %v419, %v419
          %v424 = vmul.f32 %v420, %v420
          %v425 = vmul.f32 %v421, %v421
          %v426 = vmul.f32 %v422, %v422
          %431 = vrot.lane.b32.xlu0 %v423, 1
          %v432 = vpop.permute.xlu0 %431
          %433 = vrot.lane.b32.xlu0 %v424, 1
          %v434 = vpop.permute.xlu0 %433
          %435 = vrot.lane.b32.xlu0 %v425, 1
          %v436 = vpop.permute.xlu0 %435
          %437 = vrot.lane.b32.xlu0 %v426, 1
          %v438 = vpop.permute.xlu0 %437
          %v443 = vsub.f32 %v419, %v432
          %v444 = vsub.f32 %v420, %v434
          %v445 = vsub.f32 %v421, %v436
          %v446 = vsub.f32 %v422, %v438
          %v447 = vmax.f32 %v443, 0.0
          %v448 = vmax.f32 %v444, 0.0
          %v449 = vmax.f32 %v445, 0.0
          %v450 = vmax.f32 %v446, 0.0
          %v451 = vld [vmem:[%s3] sm:$0xff]
          %v452 = vld [vmem:[%s3 + $0x8] sm:$0xff]
          %v453 = vld [vmem:[%s3 + $0x10] sm:$0xff]
          %v454 = vld [vmem:[%s3 + $0x18] sm:$0xff]
          %v455 = vadd.f32 %v447, 1e-05
          %v456 = vadd.f32 %v448, 1e-05
          %v457 = vadd.f32 %v449, 1e-05
          %v458 = vadd.f32 %v450, 1e-05
          %v459 = vrsqrt.pop %v455
          %v460 = vmul.f32 %v459, %v455
          %v461 = vmul.f32 %v460, %v459
          %v462 = vmul.f32 0.5, %v461
          %v463 = vsub.f32 1.5, %v462
          %v464 = vmul.f32 %v459, %v463
          %vm465 = vweird.f32 %v455
          %vm466 = vweird.f32 %v459
          %vm467 = vmor %vm465, %vm466
          %v468 = vsel %vm467, %v459, %v464
          %v469 = vrsqrt.pop %v456
          %v470 = vmul.f32 %v469, %v456
          %v471 = vmul.f32 %v470, %v469
          %v472 = vmul.f32 0.5, %v471
          %v473 = vsub.f32 1.5, %v472
          %v474 = vmul.f32 %v469, %v473
          %vm475 = vweird.f32 %v456
          %vm476 = vweird.f32 %v469
          %vm477 = vmor %vm475, %vm476
          %v478 = vsel %vm477, %v469, %v474
          %v479 = vrsqrt.pop %v457
          %v480 = vmul.f32 %v479, %v457
          %v481 = vmul.f32 %v480, %v479
          %v482 = vmul.f32 0.5, %v481
          %v483 = vsub.f32 1.5, %v482
          %v484 = vmul.f32 %v479, %v483
          %vm485 = vweird.f32 %v457
          %vm486 = vweird.f32 %v479
          %vm487 = vmor %vm485, %vm486
          %v488 = vsel %vm487, %v479, %v484
          %v489 = vrsqrt.pop %v458
          %v490 = vmul.f32 %v489, %v458
          %v491 = vmul.f32 %v490, %v489
          %v492 = vmul.f32 0.5, %v491
          %v493 = vsub.f32 1.5, %v492
          %v494 = vmul.f32 %v489, %v493
          %vm495 = vweird.f32 %v458
          %vm496 = vweird.f32 %v489
          %vm497 = vmor %vm495, %vm496
          %v498 = vsel %vm497, %v489, %v494
          %503 = vrot.lane.b32.xlu0 %v468, 1
          %v504 = vpop.permute.xlu0 %503
          %505 = vrot.lane.b32.xlu0 %v478, 1
          %v506 = vpop.permute.xlu0 %505
          %507 = vrot.lane.b32.xlu0 %v488, 1
          %v508 = vpop.permute.xlu0 %507
          %509 = vrot.lane.b32.xlu0 %v498, 1
          %v510 = vpop.permute.xlu0 %509
          %v515 = vmul.f32 %v451, %v504
          %v516 = vmul.f32 %v452, %v506
          %v517 = vmul.f32 %v453, %v508
          %v518 = vmul.f32 %v454, %v510
          %523 = vrot.lane.b32.xlu0 %v515, 126
          %v524 = vpop.permute.xlu0 %523
          %525 = vrot.lane.b32.xlu0 %v516, 126
          %v526 = vpop.permute.xlu0 %525
          %527 = vrot.lane.b32.xlu0 %v517, 126
          %v528 = vpop.permute.xlu0 %527
          %529 = vrot.lane.b32.xlu0 %v518, 126
          %v530 = vpop.permute.xlu0 %529
          %535 = vst.msk [vmem:[%s4] sm:$0xff] %vm374, %v524
          %536 = vst.msk [vmem:[%s4 + $0x8] sm:$0xff] %vm374, %v526
          %537 = vst.msk [vmem:[%s4 + $0x10] sm:$0xff] %vm374, %v528
          %538 = vst.msk [vmem:[%s4 + $0x18] sm:$0xff] %vm374, %v530
          %v539 = vld [vmem:[%s3] sm:$0xff]
          %v540 = vld [vmem:[%s3 + $0x8] sm:$0xff]
          %v541 = vld [vmem:[%s3 + $0x10] sm:$0xff]
          %v542 = vld [vmem:[%s3 + $0x18] sm:$0xff]
          %v543 = vmul.f32 %v419, %v524
          %v544 = vmul.f32 %v420, %v526
          %v545 = vmul.f32 %v421, %v528
          %v546 = vmul.f32 %v422, %v530
          %551 = vrot.lane.b32.xlu0 %v543, 3
          %v552 = vpop.permute.xlu0 %551
          %553 = vrot.lane.b32.xlu0 %v544, 3
          %v554 = vpop.permute.xlu0 %553
          %555 = vrot.lane.b32.xlu0 %v545, 3
          %v556 = vpop.permute.xlu0 %555
          %557 = vrot.lane.b32.xlu0 %v546, 3
          %v558 = vpop.permute.xlu0 %557
          %v563 = vsub.f32 %v539, %v552
          %v564 = vsub.f32 %v540, %v554
          %v565 = vsub.f32 %v541, %v556
          %v566 = vsub.f32 %v542, %v558
          %571 = vrot.lane.b32.xlu0 %v563, 126
          %v572 = vpop.permute.xlu0 %571
          %573 = vrot.lane.b32.xlu0 %v564, 126
          %v574 = vpop.permute.xlu0 %573
          %575 = vrot.lane.b32.xlu0 %v565, 126
          %v576 = vpop.permute.xlu0 %575
          %577 = vrot.lane.b32.xlu0 %v566, 126
          %v578 = vpop.permute.xlu0 %577
          %583 = vst.msk [vmem:[%s4] sm:$0xff] %vm407, %v572
          %584 = vst.msk [vmem:[%s4 + $0x8] sm:$0xff] %vm407, %v574
          %585 = vst.msk [vmem:[%s4 + $0x10] sm:$0xff] %vm407, %v576
          %586 = vst.msk [vmem:[%s4 + $0x18] sm:$0xff] %vm407, %v578
        $region48: #{tpu_custom_call.1} parent=43 // pred_fallthru
          _
      $region44: #{tpu_custom_call.1} parent=35 // pred_fallthru
        _
      %p587 = scmp.eq.s32.totalorder %s19, 1
      // Predicated region
      $region49: #{tpu_custom_call.1} parent=35 // pred_check
        %p588 = pneg %p587
      $region50: #{tpu_custom_call.1} parent=35 // pred_check_branch
        %590 = sbr.rel (%p588) target = $region52
      $region51: #{tpu_custom_call.1} parent=35 // pred_region
        %v591 = vld [vmem:[%s4] sm:$0xff]
        %v592 = vld [vmem:[%s4 + $0x8] sm:$0xff]
        %v593 = vld [vmem:[%s4 + $0x10] sm:$0xff]
        %v594 = vld [vmem:[%s4 + $0x18] sm:$0xff]
        %596 = vset.pattern.permute.xlu0 0
        %597 = vperm.xlu0 %596, %v591
        %v598 = vpop.permute.xlu0 %597
        %601 = vset.pattern.permute.xlu0 0
        %602 = vperm.xlu0 %601, %v592
        %v603 = vpop.permute.xlu0 %602
        %606 = vset.pattern.permute.xlu0 0
        %607 = vperm.xlu0 %606, %v593
        %v608 = vpop.permute.xlu0 %607
        %611 = vset.pattern.permute.xlu0 0
        %612 = vperm.xlu0 %611, %v594
        %v613 = vpop.permute.xlu0 %612
        %v615 = vmul.f32 %v322, %v598
        %v616 = vmul.f32 %v323, %v598
        %v617 = vmul.f32 %v324, %v603
        %v618 = vmul.f32 %v325, %v603
        %v619 = vmul.f32 %v326, %v608
        %v620 = vmul.f32 %v327, %v608
        %v621 = vmul.f32 %v328, %v613
        %v622 = vmul.f32 %v329, %v613
        %623 = vset.pattern.permute.xlu0 1
        %624 = vperm.xlu0 %623, %v591
        %v625 = vpop.permute.xlu0 %624
        %627 = vset.pattern.permute.xlu0 1
        %628 = vperm.xlu0 %627, %v592
        %v629 = vpop.permute.xlu0 %628
        %631 = vset.pattern.permute.xlu0 1
        %632 = vperm.xlu0 %631, %v593
        %v633 = vpop.permute.xlu0 %632
        %635 = vset.pattern.permute.xlu0 1
        %636 = vperm.xlu0 %635, %v594
        %v637 = vpop.permute.xlu0 %636
        %v639 = vadd.f32 %v615, %v625
        %v640 = vadd.f32 %v616, %v625
        %v641 = vadd.f32 %v617, %v629
        %v642 = vadd.f32 %v618, %v629
        %v643 = vadd.f32 %v619, %v633
        %v644 = vadd.f32 %v620, %v633
        %v645 = vadd.f32 %v621, %v637
        %v646 = vadd.f32 %v622, %v637
        %v647 = vld [vmem:[%s2] sm:$0xff]
        %v648 = vld [vmem:[%s2 + $0x8] sm:$0xff]
        %v649 = vld [vmem:[%s3] sm:$0xff]
        %v650 = vld [vmem:[%s3 + $0x8] sm:$0xff]
        %652 = vset.pattern.permute.xlu0 1
        %653 = vperm.xlu0 %652, %v649
        %v654 = vpop.permute.xlu0 %653
        %657 = vset.pattern.permute.xlu0 1
        %658 = vperm.xlu0 %657, %v650
        %v659 = vpop.permute.xlu0 %658
        %vm661 = vcmask 261120
        %v663 = vsel %vm661, %v647, 0
        %v666 = vsel %vm661, %v648, 0
        %668 = vmatpush.msra.mxu0 0.0
        %669 = vmatpush.msra.mxu0 0.0
        %670 = vmatpush.msra.mxu0 0.0
        %671 = vmatpush.msra.mxu0 0.0
        %672 = vmatpush.msra.mxu0 0.0
        %673 = vmatpush.msra.mxu0 0.0
        %674 = vmatpush.msra.mxu0 0.0
        %675 = vmatpush.msra.mxu0 0.0
        %676 = vmatpush.msra.mxu0 0.0
        %677 = vmatpush.msra.mxu0 0.0
        %678 = vmatpush.msra.mxu0 0.0
        %679 = vmatpush.msra.mxu0 0.0
        %680 = vmatpush.msra.mxu0 %v645
        %681 = vmatpush.msra.mxu0 %v643
        %682 = vmatpush.msra.mxu0 %v641
        %683 = vmatpush.msra.mxu0 %v639
        %684 = vmatmul.f32.gmra.mxu0 %v663
        %v685 = vpop.f32.mrf.mxu0
        %v686 = vadd.f32 %v654, %v685
        %687 = vmatmul.f32.gmra.mxu0 %v666
        %v688 = vpop.f32.mrf.mxu0
        %v689 = vadd.f32 %v659, %v688
        %690 = vdwg.mxu0
        %691 = vmatpush.msra.mxu0 0.0
        %692 = vmatpush.msra.mxu0 0.0
        %693 = vmatpush.msra.mxu0 0.0
        %694 = vmatpush.msra.mxu0 0.0
        %695 = vmatpush.msra.mxu0 0.0
        %696 = vmatpush.msra.mxu0 0.0
        %697 = vmatpush.msra.mxu0 0.0
        %698 = vmatpush.msra.mxu0 0.0
        %699 = vmatpush.msra.mxu0 0.0
        %700 = vmatpush.msra.mxu0 0.0
        %701 = vmatpush.msra.mxu0 0.0
        %702 = vmatpush.msra.mxu0 0.0
        %703 = vmatpush.msra.mxu0 %v646
        %704 = vmatpush.msra.mxu0 %v644
        %705 = vmatpush.msra.mxu0 %v642
        %706 = vmatpush.msra.mxu0 %v640
        %707 = vmatmul.f32.gmra.mxu0 %v663
        %v708 = vpop.f32.mrf.mxu0
        %v709 = vadd.f32 %v654, %v708
        %710 = vmatmul.f32.gmra.mxu0 %v666
        %v711 = vpop.f32.mrf.mxu0
        %v712 = vadd.f32 %v659, %v711
        %713 = vdwg.mxu0
        %v714 = vmax.f32 %v686, 0.0
        %v715 = vmax.f32 %v709, 0.0
        %v716 = vmax.f32 %v689, 0.0
        %v717 = vmax.f32 %v712, 0.0
        %v718 = vsel %vm337, 1, 0
        %v719 = vsel %vm338, 1, 0
        %vm720 = vcmp.eq.s32.totalorder %v718, 1
        %vm721 = vcmp.eq.s32.totalorder %v719, 1
        %v722 = vsel %vm720, %v714, 0.0
        %v723 = vsel %vm721, %v715, 0.0
        %v724 = vsel %vm720, %v716, 0.0
        %v725 = vsel %vm721, %v717, 0.0
        %v726 = vld [vmem:[#allocation2] sm:$0xff]
        %v727 = vld [vmem:[#allocation2 + $0x8] sm:$0xff]
        %v728 = vadd.f32 %v722, %v723
        %729 = vadd.xlane.f32.xlu0 %v728
        %v730 = vpop.xlane.xlu0 %729
        %v731 = vadd.f32 %v724, %v725
        %732 = vadd.xlane.f32.xlu0 %v731
        %v733 = vpop.xlane.xlu0 %732
        %v734 = vadd.f32 %v726, %v730
        %v735 = vadd.f32 %v727, %v733
        %vm736 = vcmask 23568
        %737 = vst.msk [vmem:[#allocation2] sm:$0xff] %vm736, %v734
        %738 = vst.msk [vmem:[#allocation2 + $0x8] sm:$0xff] %vm736, %v735
        %v739 = vld [vmem:[#allocation2] sm:$0xff]
        %v740 = vld [vmem:[#allocation2 + $0x8] sm:$0xff]
        %v741 = vmul.f32 %v722, %v722
        %v742 = vmul.f32 %v723, %v723
        %v743 = vmul.f32 %v724, %v724
        %v744 = vmul.f32 %v725, %v725
        %v745 = vadd.f32 %v741, %v742
        %746 = vadd.xlane.f32.xlu0 %v745
        %v747 = vpop.xlane.xlu0 %746
        %v748 = vadd.f32 %v743, %v744
        %749 = vadd.xlane.f32.xlu0 %v748
        %v750 = vpop.xlane.xlu0 %749
        %v751 = vadd.f32 %v739, %v747
        %v752 = vadd.f32 %v740, %v750
        %vm753 = vcmask 31768
        %754 = vst.msk [vmem:[#allocation2] sm:$0xff] %vm753, %v751
        %755 = vst.msk [vmem:[#allocation2 + $0x8] sm:$0xff] %vm753, %v752
        // Predicated region
        $region53: #{tpu_custom_call.1} parent=51 // pred_check
          %p756 = pneg %p198
        $region54: #{tpu_custom_call.1} parent=51 // pred_check_branch
          %758 = sbr.rel (%p756) target = $region56
        $region55: #{tpu_custom_call.1} parent=51 // pred_region
          %v759 = vld [vmem:[#allocation2] sm:$0xff]
          %v760 = vld [vmem:[#allocation2 + $0x8] sm:$0xff]
          %v761 = vmul.f32 %v759, 0.005
          %v762 = vmul.f32 %v760, 0.005
          %v763 = vmul.f32 %v761, %v761
          %v764 = vmul.f32 %v762, %v762
          %767 = vrot.lane.b32.xlu0 %v763, 1
          %v768 = vpop.permute.xlu0 %767
          %769 = vrot.lane.b32.xlu0 %v764, 1
          %v770 = vpop.permute.xlu0 %769
          %v773 = vsub.f32 %v761, %v768
          %v774 = vsub.f32 %v762, %v770
          %v775 = vmax.f32 %v773, 0.0
          %v776 = vmax.f32 %v774, 0.0
          %v777 = vld [vmem:[%s3] sm:$0xff]
          %v778 = vld [vmem:[%s3 + $0x8] sm:$0xff]
          %v779 = vadd.f32 %v775, 1e-05
          %v780 = vadd.f32 %v776, 1e-05
          %v781 = vrsqrt.pop %v779
          %v782 = vmul.f32 %v781, %v779
          %v783 = vmul.f32 %v782, %v781
          %v784 = vmul.f32 0.5, %v783
          %v785 = vsub.f32 1.5, %v784
          %v786 = vmul.f32 %v781, %v785
          %vm787 = vweird.f32 %v779
          %vm788 = vweird.f32 %v781
          %vm789 = vmor %vm787, %vm788
          %v790 = vsel %vm789, %v781, %v786
          %v791 = vrsqrt.pop %v780
          %v792 = vmul.f32 %v791, %v780
          %v793 = vmul.f32 %v792, %v791
          %v794 = vmul.f32 0.5, %v793
          %v795 = vsub.f32 1.5, %v794
          %v796 = vmul.f32 %v791, %v795
          %vm797 = vweird.f32 %v780
          %vm798 = vweird.f32 %v791
          %vm799 = vmor %vm797, %vm798
          %v800 = vsel %vm799, %v791, %v796
          %803 = vrot.lane.b32.xlu0 %v790, 1
          %v804 = vpop.permute.xlu0 %803
          %805 = vrot.lane.b32.xlu0 %v800, 1
          %v806 = vpop.permute.xlu0 %805
          %v809 = vmul.f32 %v777, %v804
          %v810 = vmul.f32 %v778, %v806
          %813 = vrot.lane.b32.xlu0 %v809, 126
          %v814 = vpop.permute.xlu0 %813
          %815 = vrot.lane.b32.xlu0 %v810, 126
          %v816 = vpop.permute.xlu0 %815
          %819 = vst.msk [vmem:[%s4] sm:$0xff] %vm736, %v814
          %820 = vst.msk [vmem:[%s4 + $0x8] sm:$0xff] %vm736, %v816
          %v821 = vld [vmem:[%s3] sm:$0xff]
          %v822 = vld [vmem:[%s3 + $0x8] sm:$0xff]
          %v823 = vmul.f32 %v761, %v814
          %v824 = vmul.f32 %v762, %v816
          %827 = vrot.lane.b32.xlu0 %v823, 3
          %v828 = vpop.permute.xlu0 %827
          %829 = vrot.lane.b32.xlu0 %v824, 3
          %v830 = vpop.permute.xlu0 %829
          %v833 = vsub.f32 %v821, %v828
          %v834 = vsub.f32 %v822, %v830
          %837 = vrot.lane.b32.xlu0 %v833, 126
          %v838 = vpop.permute.xlu0 %837
          %839 = vrot.lane.b32.xlu0 %v834, 126
          %v840 = vpop.permute.xlu0 %839
          %843 = vst.msk [vmem:[%s4] sm:$0xff] %vm753, %v838
          %844 = vst.msk [vmem:[%s4 + $0x8] sm:$0xff] %vm753, %v840
        $region56: #{tpu_custom_call.1} parent=51 // pred_fallthru
          _
      $region52: #{tpu_custom_call.1} parent=35 // pred_fallthru
        _
      // Predicated region
      $region57: #{tpu_custom_call.1} parent=35 // pred_check
        %p845 = pneg %p129
      $region58: #{tpu_custom_call.1} parent=35 // pred_check_branch
        %847 = sbr.rel (%p845) target = $region60
      $region59: #{tpu_custom_call.1} parent=35 // pred_region
        _
      $region60: #{tpu_custom_call.1} parent=35 // pred_fallthru
        _
      // Predicated region
      $region61: #{tpu_custom_call.1} parent=35 // pred_check
        %p848 = pneg %p129
      $region62: #{tpu_custom_call.1} parent=35 // pred_check_branch
        %850 = sbr.rel (%p848) target = $region64
      $region63: #{tpu_custom_call.1} parent=35 // pred_region
        _
      $region64: #{tpu_custom_call.1} parent=35 // pred_fallthru
        _
    $region36: #{tpu_custom_call.1} parent=5 // pred_fallthru
      _
    %p851 = scmp.le.s32.totalorder 2, %s10
    // Predicated region
    $region65: #{tpu_custom_call.1} parent=5 // pred_check
      %p852 = pneg %p851
    $region66: #{tpu_custom_call.1} parent=5 // pred_check_branch
      %854 = sbr.rel (%p852) target = $region68
    $region67: #{tpu_custom_call.1} parent=5 // pred_region
      %s855 = ssub.s32 %s10, 2
    $region68: #{tpu_custom_call.1} parent=5 // pred_fallthru
      _
  $region6: #{tpu_custom_call.1} parent=0 // loop_footer
    %s14 = sadd.s32 1, %s10
  $region7: #{tpu_custom_call.1} parent=0 // loop_footer_branch
    %9 = sbr.rel target = $region3
  $region8: #{tpu_custom_call.1} parent=0 // loop_exit
    _

</llo_original>
